<compile_context>
chip_gen: v7x
topology: tpu7x:2x2x1
jax: 0.10.0
libtpu: 0.0.40
codegen_flags: <defaults>
</compile_context>

<pallas_src>
import functools

import jax
import jax.numpy as jnp
from jax.experimental import pallas as pl
from jax.experimental.pallas import tpu as pltpu


def _round_up(x: int, m: int) -> int:
    return ((x + m - 1) // m) * m


# Safe on every generation: v5e/v6e have 128 MiB physical VMEM, v7x has 64 MiB.
_VMEM_LIMIT_BYTES = 32 * 1024 * 1024
# Double-buffered *input block* budget; <= v5e's 16 MiB default scoped limit
# and leaves headroom inside _VMEM_LIMIT_BYTES for compiler temporaries.
_INPUT_BUDGET_BYTES = 12 * 1024 * 1024


def _pick_tile_b(B: int, C: int, D: int) -> int:
    """Largest batch tile whose double-buffered input blocks fit the budget."""
    cp = _round_up(C, 128)          # VMEM blocks are lane-padded to 128
    dp = _round_up(D, 128)
    lane_label = 128                # (TB,1) int32 block lane-pads to 128 words/row
    per_row_pipeline = 2 * 4 * (cp + 2 * dp + lane_label)   # 2 buffers, f32 worst case
    per_row_temps = 4 * (2 * cp + dp + 16)                  # rough in-kernel f32 temporaries
    tb = _INPUT_BUDGET_BYTES // (per_row_pipeline + per_row_temps)
    tb = min(int(tb), 1024)         # measured roofline plateau at 512-1024 rows
    tb = (tb // 32) * 32            # multiple of 32: f32/bf16/int8 sublane packing
    if tb <= 0:
        tb = 8
    if tb >= B:
        tb = _round_up(B, 8)        # single tile covers the whole batch
    return tb


def _loss_kernel(pre_ref, label_ref, anc_ref, cand_ref, out_ref,
                 *, margin: float, loss_trade: float,
                 batch_size: int, tile_b: int):
    i = pl.program_id(0)

    pre = pre_ref[...].astype(jnp.float32)        # (TB, C)
    label = label_ref[...]                        # (TB, 1) int32
    anc = anc_ref[...].astype(jnp.float32)        # (TB, D)
    cand = cand_ref[...].astype(jnp.float32)      # (TB, D)

    # Ragged last tile: rows past batch_size contain uninitialized VMEM.
    # Neutralize them BEFORE exp/rsqrt (0 * nan == nan), then mask the sum.
    row = jax.lax.broadcasted_iota(jnp.int32, (tile_b, 1), 0)
    valid = row + i * tile_b < batch_size                      # (TB, 1) bool
    pre = jnp.where(valid, pre, 0.0)
    anc = jnp.where(valid, anc, 0.0)
    cand = jnp.where(valid, cand, 0.0)
    label = jnp.where(valid, label, 0)

    # ---- cosine distance: 1 - dot / max(||a||*||b||, eps) via one rsqrt ----
    dot = jnp.sum(anc * cand, axis=-1, keepdims=True)          # (TB, 1)
    na2 = jnp.sum(anc * anc, axis=-1, keepdims=True)
    nb2 = jnp.sum(cand * cand, axis=-1, keepdims=True)
    cos = dot * jax.lax.rsqrt(jnp.maximum(na2 * nb2, 1e-16))
    dist = 1.0 - cos                                            # (TB, 1)

    # ---- contrastive term (per-row; mean is taken in the wrapper) ----
    lab_f = label.astype(jnp.float32)
    hinge = jnp.maximum(margin - dist, 0.0)
    contra = 0.5 * ((1.0 - lab_f) * dist * dist + lab_f * hinge * hinge)

    # ---- cross entropy: ce = logsumexp(pre) - pre[label] (fused gather) ----
    m = jnp.max(pre, axis=-1, keepdims=True)
    z = pre - m
    lse = jnp.log(jnp.sum(jnp.exp(z), axis=-1, keepdims=True))
    cls_idx = jax.lax.broadcasted_iota(jnp.int32, z.shape, dimension=1)
    picked = jnp.sum(jnp.where(cls_idx == label, z, 0.0), axis=-1, keepdims=True)
    ce = lse - picked                                           # (TB, 1)

    vmask = valid.astype(jnp.float32)
    partial = jnp.sum(vmask * (loss_trade * contra + ce))
    out_ref[...] = partial.reshape(1, 1, 1)


def crossentropy_contrastive_loss(pre, label, rep_anchor, rep_candidate,
                                  margin: float = 0.5, loss_trade: float = 0.5,
                                  tile_b: int | None = None):
    """Pallas-TPU forward of CrossentropyLoss_ContrastiveLoss (COSINE_DISTANCE)."""
    B, C = pre.shape
    _, D = rep_anchor.shape
    label2d = label.astype(jnp.int32).reshape(B, 1)

    if tile_b is None:
        tile_b = _pick_tile_b(B, C, D)
    tile_b = max(8, (int(tile_b) // 8) * 8)

    num_tiles = pl.cdiv(B, tile_b)
    kernel = functools.partial(_loss_kernel, margin=float(margin),
                               loss_trade=float(loss_trade),
                               batch_size=B, tile_b=tile_b)

    partials = pl.pallas_call(
        kernel,
        out_shape=jax.ShapeDtypeStruct((num_tiles, 1, 1), jnp.float32),
        grid=(num_tiles,),
        in_specs=[
            pl.BlockSpec((tile_b, C), lambda i: (i, 0)),
            pl.BlockSpec((tile_b, 1), lambda i: (i, 0)),
            pl.BlockSpec((tile_b, D), lambda i: (i, 0)),
            pl.BlockSpec((tile_b, D), lambda i: (i, 0)),
        ],
        out_specs=pl.BlockSpec((1, 1, 1), lambda i: (i, 0, 0)),
        compiler_params=pltpu.CompilerParams(
            dimension_semantics=("parallel",),      # tiles independent -> megacore on v7x
            vmem_limit_bytes=_VMEM_LIMIT_BYTES),
    )(pre, label2d, rep_anchor, rep_candidate)

    # Reduce the (num_tiles,) partial sums and take the mean over true B.
    return jnp.sum(partials) * jnp.float32(1.0 / B)


def _reference(pre, label, rep_anchor, rep_candidate, margin=0.5, loss_trade=0.5):
    # Pure-JAX reference mirroring the PyTorch module.
    pre = pre.astype(jnp.float32)
    rep_anchor = rep_anchor.astype(jnp.float32)
    rep_candidate = rep_candidate.astype(jnp.float32)
    dot = jnp.sum(rep_anchor * rep_candidate, axis=-1)
    na = jnp.linalg.norm(rep_anchor, axis=-1)
    nb = jnp.linalg.norm(rep_candidate, axis=-1)
    dist = 1.0 - dot / jnp.maximum(na * nb, 1e-8)
    lab_f = label.astype(jnp.float32)
    contra = 0.5 * ((1.0 - lab_f) * dist ** 2
                    + lab_f * jnp.maximum(margin - dist, 0.0) ** 2)
    loss_contra = jnp.mean(contra)
    logp = jax.nn.log_softmax(pre, axis=-1)
    ce = -jnp.take_along_axis(logp, label[:, None].astype(jnp.int32), axis=-1)[:, 0]
    return loss_trade * loss_contra + jnp.mean(ce)


if __name__ == "__main__":
    key = jax.random.PRNGKey(0)

    # Case 1: small single-tile (B=8, binary classes, D=32).
    k1, k2, k3, k4, key = jax.random.split(key, 5)
    B, C, D = 8, 2, 32
    pre = jax.random.normal(k1, (B, C), dtype=jnp.float32)
    label = jax.random.randint(k2, (B,), 0, 2, dtype=jnp.int32)
    rep_anchor = jax.random.normal(k3, (B, D), dtype=jnp.float32)
    rep_candidate = jax.random.normal(k4, (B, D), dtype=jnp.float32)

    loss = crossentropy_contrastive_loss(pre, label, rep_anchor, rep_candidate,
                                         margin=0.5, loss_trade=0.5)
    loss = jax.block_until_ready(loss)
    ref = _reference(pre, label, rep_anchor, rep_candidate, 0.5, 0.5)
    assert jnp.allclose(loss, ref, atol=1e-5, rtol=1e-5), (loss, ref)

    # Case 2: multi-tile with a ragged last tile (B=50, TB=16) exercising the
    # in-kernel sanitization/mask and the per-tile partial-sum output.
    k1, k2, k3, k4, key = jax.random.split(key, 5)
    B, C, D = 50, 2, 64
    pre = jax.random.normal(k1, (B, C), dtype=jnp.float32)
    label = jax.random.randint(k2, (B,), 0, 2, dtype=jnp.int32)
    rep_anchor = jax.random.normal(k3, (B, D), dtype=jnp.float32)
    rep_candidate = jax.random.normal(k4, (B, D), dtype=jnp.float32)

    loss2 = crossentropy_contrastive_loss(pre, label, rep_anchor, rep_candidate,
                                          margin=0.5, loss_trade=0.5, tile_b=16)
    loss2 = jax.block_until_ready(loss2)
    ref2 = _reference(pre, label, rep_anchor, rep_candidate, 0.5, 0.5)
    assert jnp.allclose(loss2, ref2, atol=1e-5, rtol=1e-5), (loss2, ref2)

    print("KERNEL_OK")
</pallas_src>

<mosaic_0001>
module attributes {stable_mosaic.version = 11 : i64} {
  func.func @_loss_kernel(%arg0: i32, %arg1: memref<8x2xf32, #tpu.memory_space<vmem>>, %arg2: memref<8x1xi32, #tpu.memory_space<vmem>>, %arg3: memref<8x32xf32, #tpu.memory_space<vmem>>, %arg4: memref<8x32xf32, #tpu.memory_space<vmem>>, %arg5: memref<1x1x1xf32, #tpu.memory_space<vmem>>) attributes {dimension_semantics = [#tpu.dimension_semantics<parallel>], iteration_bounds = array<i64: 1>, scalar_prefetch = 0 : i64, scratch_operands = 0 : i64, tpu.core_type = #tpu.core_type<tc>, window_params = [{transform_indices = @transform_0, window_bounds = array<i64: 8, 2>}, {transform_indices = @transform_1, window_bounds = array<i64: 8, 1>}, {transform_indices = @transform_2, window_bounds = array<i64: 8, 32>}, {transform_indices = @transform_3, window_bounds = array<i64: 8, 32>}, {transform_indices = @transform_4, window_bounds = array<i64: 1, 1, 1>}]} {
    %c0 = arith.constant 0 : index
    %c0_0 = arith.constant 0 : index
    %0 = vector.load %arg1[%c0, %c0_0] : memref<8x2xf32, #tpu.memory_space<vmem>>, vector<8x2xf32>
    %c0_1 = arith.constant 0 : index
    %c0_2 = arith.constant 0 : index
    %1 = vector.load %arg2[%c0_1, %c0_2] : memref<8x1xi32, #tpu.memory_space<vmem>>, vector<8x1xi32>
    %c0_3 = arith.constant 0 : index
    %c0_4 = arith.constant 0 : index
    %2 = vector.load %arg3[%c0_3, %c0_4] : memref<8x32xf32, #tpu.memory_space<vmem>>, vector<8x32xf32>
    %c0_5 = arith.constant 0 : index
    %c0_6 = arith.constant 0 : index
    %3 = vector.load %arg4[%c0_5, %c0_6] : memref<8x32xf32, #tpu.memory_space<vmem>>, vector<8x32xf32>
    %4 = tpu.iota {dimensions = array<i32: 0>} : vector<8x1xi32>
    %c8_i32 = arith.constant 8 : i32
    %5 = arith.muli %arg0, %c8_i32 : i32
    %6 = vector.broadcast %5 : i32 to vector<8x1xi32>
    %7 = arith.addi %4, %6 : vector<8x1xi32>
    %c8_i32_7 = arith.constant 8 : i32
    %8 = vector.broadcast %c8_i32_7 : i32 to vector<8x1xi32>
    %9 = arith.cmpi slt, %7, %8 : vector<8x1xi32>
    %cst = arith.constant 0.000000e+00 : f32
    %10 = vector.shape_cast %9 : vector<8x1xi1> to vector<8x1xi1>
    %11 = vector.broadcast %10 : vector<8x1xi1> to vector<8x2xi1>
    %12 = vector.broadcast %cst : f32 to vector<8x2xf32>
    %13 = arith.select %11, %0, %12 : vector<8x2xi1>, vector<8x2xf32>
    %cst_8 = arith.constant 0.000000e+00 : f32
    %14 = vector.shape_cast %9 : vector<8x1xi1> to vector<8x1xi1>
    %15 = vector.broadcast %14 : vector<8x1xi1> to vector<8x32xi1>
    %16 = vector.broadcast %cst_8 : f32 to vector<8x32xf32>
    %17 = arith.select %15, %2, %16 : vector<8x32xi1>, vector<8x32xf32>
    %cst_9 = arith.constant 0.000000e+00 : f32
    %18 = vector.shape_cast %9 : vector<8x1xi1> to vector<8x1xi1>
    %19 = vector.broadcast %18 : vector<8x1xi1> to vector<8x32xi1>
    %20 = vector.broadcast %cst_9 : f32 to vector<8x32xf32>
    %21 = arith.select %19, %3, %20 : vector<8x32xi1>, vector<8x32xf32>
    %c0_i32 = arith.constant 0 : i32
    %22 = vector.broadcast %c0_i32 : i32 to vector<8x1xi32>
    %23 = arith.select %9, %1, %22 : vector<8x1xi1>, vector<8x1xi32>
    %24 = arith.mulf %17, %21 : vector<8x32xf32>
    %cst_10 = arith.constant dense<0.000000e+00> : vector<8xf32>
    %25 = vector.multi_reduction <add>, %24, %cst_10 [1] : vector<8x32xf32> to vector<8xf32>
    %26 = vector.shape_cast %25 : vector<8xf32> to vector<8x1xf32>
    %27 = arith.mulf %17, %17 : vector<8x32xf32>
    %cst_11 = arith.constant dense<0.000000e+00> : vector<8xf32>
    %28 = vector.multi_reduction <add>, %27, %cst_11 [1] : vector<8x32xf32> to vector<8xf32>
    %29 = vector.shape_cast %28 : vector<8xf32> to vector<8x1xf32>
    %30 = arith.mulf %21, %21 : vector<8x32xf32>
    %cst_12 = arith.constant dense<0.000000e+00> : vector<8xf32>
    %31 = vector.multi_reduction <add>, %30, %cst_12 [1] : vector<8x32xf32> to vector<8xf32>
    %32 = vector.shape_cast %31 : vector<8xf32> to vector<8x1xf32>
    %33 = arith.mulf %29, %32 : vector<8x1xf32>
    %cst_13 = arith.constant 1.000000e-16 : f32
    %34 = vector.broadcast %cst_13 : f32 to vector<8x1xf32>
    %35 = arith.maximumf %33, %34 : vector<8x1xf32>
    %36 = math.rsqrt %35 : vector<8x1xf32>
    %37 = arith.mulf %26, %36 : vector<8x1xf32>
    %cst_14 = arith.constant 1.000000e+00 : f32
    %38 = vector.broadcast %cst_14 : f32 to vector<8x1xf32>
    %39 = arith.subf %38, %37 : vector<8x1xf32>
    %40 = arith.sitofp %23 : vector<8x1xi32> to vector<8x1xf32>
    %cst_15 = arith.constant 5.000000e-01 : f32
    %41 = vector.broadcast %cst_15 : f32 to vector<8x1xf32>
    %42 = arith.subf %41, %39 : vector<8x1xf32>
    %cst_16 = arith.constant 0.000000e+00 : f32
    %43 = vector.broadcast %cst_16 : f32 to vector<8x1xf32>
    %44 = arith.maximumf %42, %43 : vector<8x1xf32>
    %cst_17 = arith.constant 1.000000e+00 : f32
    %45 = vector.broadcast %cst_17 : f32 to vector<8x1xf32>
    %46 = arith.subf %45, %40 : vector<8x1xf32>
    %47 = arith.mulf %46, %39 : vector<8x1xf32>
    %48 = arith.mulf %47, %39 : vector<8x1xf32>
    %49 = arith.mulf %40, %44 : vector<8x1xf32>
    %50 = arith.mulf %49, %44 : vector<8x1xf32>
    %51 = arith.addf %48, %50 : vector<8x1xf32>
    %cst_18 = arith.constant 5.000000e-01 : f32
    %52 = vector.broadcast %cst_18 : f32 to vector<8x1xf32>
    %53 = arith.mulf %52, %51 : vector<8x1xf32>
    %cst_19 = arith.constant dense<0xFF800000> : vector<8xf32>
    %54 = vector.multi_reduction <maximumf>, %13, %cst_19 [1] : vector<8x2xf32> to vector<8xf32>
    %55 = vector.shape_cast %54 : vector<8xf32> to vector<8x1xf32>
    %56 = vector.broadcast %55 : vector<8x1xf32> to vector<8x2xf32>
    %57 = arith.subf %13, %56 : vector<8x2xf32>
    %58 = math.exp %57 : vector<8x2xf32>
    %cst_20 = arith.constant dense<0.000000e+00> : vector<8xf32>
    %59 = vector.multi_reduction <add>, %58, %cst_20 [1] : vector<8x2xf32> to vector<8xf32>
    %60 = vector.shape_cast %59 : vector<8xf32> to vector<8x1xf32>
    %61 = math.log %60 : vector<8x1xf32>
    %62 = tpu.iota {dimensions = array<i32: 1>} : vector<8x2xi32>
    %63 = vector.broadcast %23 : vector<8x1xi32> to vector<8x2xi32>
    %64 = arith.cmpi eq, %62, %63 : vector<8x2xi32>
    %cst_21 = arith.constant 0.000000e+00 : f32
    %65 = vector.broadcast %cst_21 : f32 to vector<8x2xf32>
    %66 = arith.select %64, %57, %65 : vector<8x2xi1>, vector<8x2xf32>
    %cst_22 = arith.constant dense<0.000000e+00> : vector<8xf32>
    %67 = vector.multi_reduction <add>, %66, %cst_22 [1] : vector<8x2xf32> to vector<8xf32>
    %68 = vector.shape_cast %67 : vector<8xf32> to vector<8x1xf32>
    %69 = arith.subf %61, %68 : vector<8x1xf32>
    %70 = arith.extui %9 : vector<8x1xi1> to vector<8x1xi32>
    %71 = arith.sitofp %70 : vector<8x1xi32> to vector<8x1xf32>
    %cst_23 = arith.constant 5.000000e-01 : f32
    %72 = vector.broadcast %cst_23 : f32 to vector<8x1xf32>
    %73 = arith.mulf %72, %53 : vector<8x1xf32>
    %74 = arith.addf %73, %69 : vector<8x1xf32>
    %75 = arith.mulf %71, %74 : vector<8x1xf32>
    %76 = vector.shape_cast %75 : vector<8x1xf32> to vector<1x8x1xf32>
    %cst_24 = arith.constant dense<0.000000e+00> : vector<1xf32>
    %77 = vector.multi_reduction <add>, %76, %cst_24 [1, 2] : vector<1x8x1xf32> to vector<1xf32>
    %78 = vector.shape_cast %77 : vector<1xf32> to vector<1x1x1xf32>
    %79 = vector.extract %78[0, 0, 0] : f32 from vector<1x1x1xf32>
    %80 = vector.broadcast %79 : f32 to vector<1x1x1xf32>
    %c0_25 = arith.constant 0 : index
    %c0_26 = arith.constant 0 : index
    %c0_27 = arith.constant 0 : index
    %81 = vector.load %arg5[%c0_25, %c0_26, %c0_27] : memref<1x1x1xf32, #tpu.memory_space<vmem>>, vector<1x1x1xf32>
    tpu.vector_store %arg5[%c0_25, %c0_26, %c0_27], %80 {strides = array<i32>} : memref<1x1x1xf32, #tpu.memory_space<vmem>>, vector<1x1x1xf32>,
    return
  }
  func.func @transform_0(%arg0: i32) -> (i32, i32) {
    %c0_i32 = arith.constant 0 : i32
    %c0_i32_0 = arith.constant 0 : i32
    return %arg0, %c0_i32 : i32, i32
  }
  func.func @transform_1(%arg0: i32) -> (i32, i32) {
    %c0_i32 = arith.constant 0 : i32
    %c0_i32_0 = arith.constant 0 : i32
    return %arg0, %c0_i32 : i32, i32
  }
  func.func @transform_2(%arg0: i32) -> (i32, i32) {
    %c0_i32 = arith.constant 0 : i32
    %c0_i32_0 = arith.constant 0 : i32
    return %arg0, %c0_i32 : i32, i32
  }
  func.func @transform_3(%arg0: i32) -> (i32, i32) {
    %c0_i32 = arith.constant 0 : i32
    %c0_i32_0 = arith.constant 0 : i32
    return %arg0, %c0_i32 : i32, i32
  }
  func.func @transform_4(%arg0: i32) -> (i32, i32, i32) {
    %c0_i32 = arith.constant 0 : i32
    %c0_i32_0 = arith.constant 0 : i32
    %c0_i32_1 = arith.constant 0 : i32
    return %arg0, %c0_i32, %c0_i32_0 : i32, i32, i32
  }
}

</mosaic_0001>

<llo_original>
// kernel: tpu_custom_call.1
$region0: #{tpu_custom_call.1}
  #allocation0 [shape = 'u32[]', space=smem, size = 0x4, offset = 0x4, fixed_abs, tag = 'smem constant byte address 0x4 - core index']
  #allocation1 [shape = 'u32[144,128]{1,0:T(1,128)}', space=vmem, size = 0x12000, scoped, tag = 'internal scratch']
  %s0 = inlined_call_operand.vmem [shape: f32[8,2], index: 0, kind: input, shape index: {}]
  %s1 = inlined_call_operand.vmem [shape: s32[8,1], index: 1, kind: input, shape index: {}]
  %s2 = inlined_call_operand.vmem [shape: f32[8,32], index: 2, kind: input, shape index: {}]
  %s3 = inlined_call_operand.vmem [shape: f32[8,32], index: 3, kind: input, shape index: {}]
  %s4 = inlined_call_operand.hbm [shape: f32[1,1,1], index: 4, kind: output, shape index: {}]
  %s5 = sld [smem:[#allocation0]]
  $region26: #{tpu_custom_call.1} parent=0
    _
  %s7 = ssub.s32 1, %s5
  %s8 = scalar_select 0, %s7, %s5
  $region1: #{tpu_custom_call.1} parent=0
    #allocation2 [shape = 'u8[512]{0}', space=vmem, size = 0x400, scoped, tag = 'output window, operand 0, single buffered']
    #allocation3 [shape = 's32[1]{0}', space=sflag, size = 0x4, scoped, tag = 'scoped memory for tpu_custom_call.1']
    %9 = vsyncpa [#allocation3], 0
    // Predicated region
    $region2: #{tpu_custom_call.1} parent=1 // pred_check
      _
    $region3: #{tpu_custom_call.1} parent=1 // pred_check_branch
      %11 = sbr.rel (0) target = $region5
    $region4: #{tpu_custom_call.1} parent=1 // pred_region
      _
    $region5: #{tpu_custom_call.1} parent=1 // pred_fallthru
      _
    // Predicated region
    $region6: #{tpu_custom_call.1} parent=1 // pred_check
      _
    $region7: #{tpu_custom_call.1} parent=1 // pred_check_branch
      %13 = sbr.rel (0) target = $region9
    $region8: #{tpu_custom_call.1} parent=1 // pred_region
      _
    $region9: #{tpu_custom_call.1} parent=1 // pred_fallthru
      _
    // Predicated region
    $region10: #{tpu_custom_call.1} parent=1 // pred_check
      _
    $region11: #{tpu_custom_call.1} parent=1 // pred_check_branch
      %15 = sbr.rel (0) target = $region13
    $region12: #{tpu_custom_call.1} parent=1 // pred_region
      _
    $region13: #{tpu_custom_call.1} parent=1 // pred_fallthru
      _
    // Predicated region
    $region14: #{tpu_custom_call.1} parent=1 // pred_check
      _
    $region15: #{tpu_custom_call.1} parent=1 // pred_check_branch
      %17 = sbr.rel (0) target = $region17
    $region16: #{tpu_custom_call.1} parent=1 // pred_region
      _
    $region17: #{tpu_custom_call.1} parent=1 // pred_fallthru
      _
    %v18 = vld [vmem:[%s0] sm:$0xff]
    %v19 = vld [vmem:[%s1] sm:$0xff]
    %v20 = vld [vmem:[%s2] sm:$0xff]
    %v21 = vld [vmem:[%s3] sm:$0xff]
    %v22 = vlaneseq
    %v23 = vshrl.u32 %v22, 7
    %s24 = smul.u32 0, 8
    %v25 = vstv %s24
    %v26 = vadd.s32 %v23, %v25
    %vm27 = vcmp.lt.s32.totalorder %v26, 8
    %v28 = vsel %vm27, 1, 0
    %vm29 = vcmp.eq.s32.totalorder %v28, 1
    %v30 = vsel %vm29, %v18, 0.0
    %v31 = vsel %vm29, %v20, 0.0
    %v32 = vsel %vm29, %v21, 0.0
    %v33 = vsel %vm27, %v19, 0
    %v34 = vmul.f32 %v31, %v32
    %vm35 = vcmask 261120
    %v36 = vsel %vm35, %v34, 0.0
    %37 = vadd.xlane.f32.xlu0 %v36
    %v38 = vpop.xlane.xlu0 %37
    %v39 = vmul.f32 %v31, %v31
    %v40 = vsel %vm35, %v39, 0.0
    %41 = vadd.xlane.f32.xlu0 %v40
    %v42 = vpop.xlane.xlu0 %41
    %v43 = vmul.f32 %v32, %v32
    %v44 = vsel %vm35, %v43, 0.0
    %45 = vadd.xlane.f32.xlu0 %v44
    %v46 = vpop.xlane.xlu0 %45
    %v47 = vmul.f32 %v42, %v46
    %v48 = vmax.f32 %v47, 1e-16
    %v49 = vrsqrt.pop %v48
    %v50 = vmul.f32 %v38, %v49
    %v51 = vsub.f32 1.0, %v50
    %v52 = vcvt.s32.f32 %v33
    %v53 = vsub.f32 0.5, %v51
    %v54 = vmax.f32 %v53, 0.0
    %v55 = vsub.f32 1.0, %v52
    %v56 = vmul.f32 %v55, %v51
    %v57 = vmul.f32 %v56, %v51
    %v58 = vmul.f32 %v52, %v54
    %v59 = vmul.f32 %v58, %v54
    %v60 = vadd.f32 %v57, %v59
    %v61 = vmul.f32 %v60, 0.5
    %vm62 = vcmask 15360
    %v63 = vsel %vm62, %v30, -inf
    %64 = vmax.xlane.f32.xlu0 %v63
    %v65 = vpop.xlane.xlu0 %64
    %v66 = vsub.f32 %v30, %v65
    %v67 = vmul.f32 %v66, 1.442695
    %v68 = vpow.pop %v67
    %v69 = vsel %vm62, %v68, 0.0
    %70 = vadd.xlane.f32.xlu0 %v69
    %v71 = vpop.xlane.xlu0 %70
    %v72 = vlog2.pop %v71
    %v73 = vmul.f32 %v72, 0.6931472
    %v74 = vlaneseq
    %v75 = vand.u32 %v74, 127
    %76 = vset.pattern.permute.xlu0 0
    %77 = vperm.xlu0 %76, %v33
    %v78 = vpop.permute.xlu0 %77
    %vm79 = vcmp.eq.s32.totalorder %v75, %v78
    %v80 = vsel %vm79, %v66, 0.0
    %v81 = vsel %vm62, %v80, 0.0
    %82 = vadd.xlane.f32.xlu0 %v81
    %v83 = vpop.xlane.xlu0 %82
    %v84 = vsub.f32 %v73, %v83
    %v85 = vcvt.s32.f32 %v28
    %v86 = vmul.f32 %v61, 0.5
    %v87 = vadd.f32 %v86, %v84
    %v88 = vmul.f32 %v85, %v87
    %vm89 = vcmask 7168
    %v90 = vsel %vm89, %v88, 0.0
    %91 = vadd.xlane.f32.xlu0 %v90
    %v92 = vpop.xlane.xlu0 %91
    %v93 = vrot.slane %v92, 4
    %v94 = vadd.f32 %v92, %v93
    %v95 = vrot.slane %v94, 2
    %v96 = vadd.f32 %v94, %v95
    %v97 = vrot.slane %v96, 1
    %v98 = vadd.f32 %v96, %v97
    %s99 = vtos %v98
    %v100 = vstv %s99
    %vm101 = vcmask 0
    %102 = vst.msk [vmem:[#allocation2] sm:$0x1] %vm101, %v100
    // Predicated region
    $region18: #{tpu_custom_call.1} parent=1 // pred_check
      _
    $region19: #{tpu_custom_call.1} parent=1 // pred_check_branch
      %104 = sbr.rel (0) target = $region21
    $region20: #{tpu_custom_call.1} parent=1 // pred_region
      %s106 = ssub.s32 16, 16
      %107 = vsyncadd [#allocation3], %s106
      %s109 = sshll.u32 [#allocation2], 4
      %s110 = int_to_ptr.vmem [resolvable:$true] %s109
      %112 = dma.vmem_to_hbm [thread:$0]  %s110, 16, %s4, [#allocation3]
    $region21: #{tpu_custom_call.1} parent=1 // pred_fallthru
      _
    // Predicated region
    $region22: #{tpu_custom_call.1} parent=1 // pred_check
      _
    $region23: #{tpu_custom_call.1} parent=1 // pred_check_branch
      %114 = sbr.rel (0) target = $region25
    $region24: #{tpu_custom_call.1} parent=1 // pred_region
      %115 = dma.done [#allocation3], 16
    $region25: #{tpu_custom_call.1} parent=1 // pred_fallthru
      _
    %116 = vsyncpa [#allocation3], 1

</llo_original>
